<compile_context>
chip_gen: v7x
topology: tpu7x:2x2x1
jax: 0.10.0
libtpu: 0.0.40
codegen_flags: <defaults>
</compile_context>

<pallas_src>
import jax
import jax.numpy as jnp
import numpy as np
from jax.experimental import pallas as pl
from jax.experimental.pallas import tpu as pltpu


def _resblock_kernel(x_ref, m1_ref, m2_ref, b1_ref, b2_ref, mask_ref, out_ref):
    # x_ref   : (Mp, WC) f32  — N images stacked as (H+2)-row blocks; the zero
    #                           pad rows between blocks realize the conv height
    #                           padding.  WC = W*C (lane-dense, 128 here).
    # m*_ref  : (3*WC, WC) bf16 — block-banded 3x3 conv weights (BN scale
    #                           folded), taps [row-above; row; row-below]
    #                           concatenated along K.
    # b*_ref  : (1, WC) f32   — folded BN + conv bias, tiled across width.
    # mask_ref: (Mp, WC) f32  — 1.0 on real image rows, 0.0 on pad/tail rows.
    # out_ref : (Mp, WC) f32
    Mp = out_ref.shape[0]
    x = x_ref[...]                       # (Mp, WC) f32
    mask = mask_ref[...]                 # (Mp, WC) f32

    def conv3x3(rows, m_ref):
        # One K=3*WC MXU matmul per conv.  Row shifts via XLU sublane rolls;
        # the wrapped rows only pollute pad-position rows, which are discarded
        # (conv1) or masked to zero before reuse (conv2).
        up = pltpu.roll(rows, shift=1, axis=0)          # row r-1
        down = pltpu.roll(rows, shift=Mp - 1, axis=0)   # row r+1
        lhs = jnp.concatenate([up, rows, down], axis=1).astype(jnp.bfloat16)
        return jnp.dot(lhs, m_ref[...], preferred_element_type=jnp.float32)

    # conv1 (+BN scale) -> +bias -> ReLU; zero pad rows so conv2 sees correct
    # zero height-padding between images.
    y = jnp.maximum(conv3x3(x, m1_ref) + b1_ref[...], 0.0) * mask

    # conv2 (+BN scale) -> +bias -> +residual (f32-exact) -> ReLU
    z = conv3x3(y, m2_ref) + b2_ref[...] + x
    out_ref[...] = jnp.maximum(z, 0.0)


def _banded_conv_weights(w_oihw, scale, W, C):
    """(3*W*C, W*C) block-banded matrix so a 3x3 conv (padding=1) over the
    lane-dense (rows, W*C) layout becomes ONE matmul with an LHS of
    [row-above | row | row-below] concatenated along lanes.

    M[ky*WC + (w+dx)*C + ci, w*C + co] = w[co, ci, ky, dx+1] * scale[co],
    with out-of-range w+dx clipped (realizes the width zero-padding).

    TODO(synk): the dense band scales as (W*C)^2; for real ResNet channel
    counts tile the band over W (or switch to an (H*W, C) layout with 9 K=C
    matmuls) before it exceeds v7x's 64 MiB VMEM.
    """
    w_hwio = jnp.transpose(w_oihw, (2, 3, 1, 0)).astype(jnp.float32)  # (3,3,Ci,Co)
    wf = w_hwio * scale[None, None, None, :]                          # fold BN scale
    mats = []
    for ky in range(3):
        m = jnp.zeros((W * C, W * C), jnp.float32)
        for kx in range(3):
            dx = kx - 1
            e = jnp.eye(W, k=-dx, dtype=jnp.float32)   # e[w+dx, w] = 1, edge-clipped
            m = m + jnp.kron(e, wf[ky, kx])
        mats.append(m)
    # Concatenate the 3 row-taps along K; cast once to bf16 (native MXU path).
    return jnp.concatenate(mats, axis=0).astype(jnp.bfloat16)         # (3*WC, WC)


def make_resblock_params(w1, b1, w2, b2, gamma1, beta1, gamma2, beta2, W, eps=1e-5):
    """Fold inference-mode BN into conv weights/biases and build the banded
    bf16 matmul operands.  Called ONCE (hoisted out of the per-forward path)."""
    C = w1.shape[0]
    WC = W * C
    scale1 = gamma1 / jnp.sqrt(1.0 + eps)
    scale2 = gamma2 / jnp.sqrt(1.0 + eps)
    bias1 = (beta1 + b1 * scale1).astype(jnp.float32)
    bias2 = (beta2 + b2 * scale2).astype(jnp.float32)
    m1 = _banded_conv_weights(w1, scale1, W, C)
    m2 = _banded_conv_weights(w2, scale2, W, C)
    b1v = jnp.tile(bias1, W).reshape(1, WC)
    b2v = jnp.tile(bias2, W).reshape(1, WC)
    return m1, m2, b1v, b2v


@jax.jit
def resblock_forward(x_nchw, m1, m2, b1v, b2v):
    """x_nchw: (N, C, H, W) float32; m*/b*v from make_resblock_params."""
    N, C, H, W = x_nchw.shape
    WC = W * C
    Hp = H + 2
    M = N * Hp
    Mp = ((M + 7) // 8) * 8          # sublane-aligned row count

    # NCHW -> lane-dense (w, c)-flat rows; pad each image's height by 1; stack
    # the batch into the matmul M dimension (single kernel invocation).
    x2d = jnp.transpose(x_nchw, (0, 2, 3, 1)).astype(jnp.float32).reshape(N, H, WC)
    x2d = jnp.pad(x2d, ((0, 0), (1, 1), (0, 0))).reshape(M, WC)
    x2d = jnp.pad(x2d, ((0, Mp - M), (0, 0)))

    # Valid-row mask: rows 1..H inside each (H+2)-row image block.
    r = jnp.arange(Mp)
    valid = (r < M) & (r % Hp >= 1) & (r % Hp <= H)
    mask = jnp.broadcast_to(valid[:, None], (Mp, WC)).astype(jnp.float32)

    out2d = pl.pallas_call(
        _resblock_kernel,
        out_shape=jax.ShapeDtypeStruct((Mp, WC), jnp.float32),
        in_specs=[pl.BlockSpec(memory_space=pltpu.MemorySpace.VMEM)] * 6,
        out_specs=pl.BlockSpec(memory_space=pltpu.MemorySpace.VMEM),
    )(x2d, m1, m2, b1v, b2v, mask)

    # Strip pad rows and return to NCHW.
    out = out2d[:M].reshape(N, Hp, W, C)[:, 1:H + 1]
    return jnp.transpose(out, (0, 3, 1, 2))


def _reference(x_nchw, w1, b1, w2, b2, gamma1, beta1, gamma2, beta2):
    """Pure-JAX (XLA, f32) reference for the ResBlock forward (inference BN)."""
    eps = 1e-5

    def conv(x, w, b):
        y = jax.lax.conv_general_dilated(
            x, w, window_strides=(1, 1), padding=((1, 1), (1, 1)),
            dimension_numbers=("NCHW", "OIHW", "NCHW"),
            precision=jax.lax.Precision.HIGHEST)
        return y + b[None, :, None, None]

    def bn(y, gamma, beta):
        s = gamma / jnp.sqrt(1.0 + eps)
        return y * s[None, :, None, None] + beta[None, :, None, None]

    y = jax.nn.relu(bn(conv(x_nchw, w1, b1), gamma1, beta1))
    z = bn(conv(y, w2, b2), gamma2, beta2)
    return jax.nn.relu(z + x_nchw)


if __name__ == "__main__":
    N, C, H, W = 2, 8, 16, 16            # W*C = 128 -> lane-dense layout

    key = jax.random.PRNGKey(0)
    keys = jax.random.split(key, 9)
    x = jax.random.normal(keys[0], (N, C, H, W), jnp.float32)

    # Conv2d(C, C, 3, padding=1): weight (C, C, 3, 3), bias (C,)
    fan_in = C * 3 * 3
    bound = 1.0 / np.sqrt(fan_in)
    w1 = jax.random.uniform(keys[1], (C, C, 3, 3), jnp.float32, -bound, bound)
    b1 = jax.random.uniform(keys[2], (C,), jnp.float32, -bound, bound)
    w2 = jax.random.uniform(keys[3], (C, C, 3, 3), jnp.float32, -bound, bound)
    b2 = jax.random.uniform(keys[4], (C,), jnp.float32, -bound, bound)

    # BatchNorm2d affine params (deterministic non-trivial values)
    gamma1 = 1.0 + 0.1 * jax.random.normal(keys[5], (C,), jnp.float32)
    beta1 = 0.1 * jax.random.normal(keys[6], (C,), jnp.float32)
    gamma2 = 1.0 + 0.1 * jax.random.normal(keys[7], (C,), jnp.float32)
    beta2 = 0.1 * jax.random.normal(keys[8], (C,), jnp.float32)

    # One-time parameter build (banded weights, folded BN) — hoisted out of
    # the per-forward path.
    m1, m2, b1v, b2v = make_resblock_params(
        w1, b1, w2, b2, gamma1, beta1, gamma2, beta2, W)

    out = resblock_forward(x, m1, m2, b1v, b2v)
    out = jax.block_until_ready(out)

    ref = _reference(x, w1, b1, w2, b2, gamma1, beta1, gamma2, beta2)
    # Tolerance loosened vs the pure-f32 variant because the MXU inputs are
    # deliberately bf16 (f32 accumulation keeps the error bounded).
    np.testing.assert_allclose(np.asarray(out), np.asarray(ref),
                               rtol=3e-2, atol=3e-2)

    print("KERNEL_OK")
</pallas_src>

<mosaic_0001>
module attributes {stable_mosaic.version = 11 : i64} {
  func.func @_resblock_kernel(%arg0: memref<40x128xf32, #tpu.memory_space<vmem>>, %arg1: memref<384x128xbf16, #tpu.memory_space<vmem>>, %arg2: memref<384x128xbf16, #tpu.memory_space<vmem>>, %arg3: memref<1x128xf32, #tpu.memory_space<vmem>>, %arg4: memref<1x128xf32, #tpu.memory_space<vmem>>, %arg5: memref<40x128xf32, #tpu.memory_space<vmem>>, %arg6: memref<40x128xf32, #tpu.memory_space<vmem>>) attributes {dimension_semantics = [], scalar_prefetch = 0 : i64, scratch_operands = 0 : i64, tpu.core_type = #tpu.core_type<tc>} {
    %c0 = arith.constant 0 : index
    %c0_0 = arith.constant 0 : index
    %0 = vector.load %arg0[%c0, %c0_0] : memref<40x128xf32, #tpu.memory_space<vmem>>, vector<40x128xf32>
    %c0_1 = arith.constant 0 : index
    %c0_2 = arith.constant 0 : index
    %1 = vector.load %arg5[%c0_1, %c0_2] : memref<40x128xf32, #tpu.memory_space<vmem>>, vector<40x128xf32>
    %c1_i32 = arith.constant 1 : i32
    %2 = tpu.dynamic_rotate %0 by %c1_i32 dim 0 : vector<40x128xf32>, i32 -> vector<40x128xf32>
    %c39_i32 = arith.constant 39 : i32
    %3 = tpu.dynamic_rotate %0 by %c39_i32 dim 0 : vector<40x128xf32>, i32 -> vector<40x128xf32>
    %4 = tpu.concatenate %2, %0, %3 in 1 : vector<40x128xf32>, vector<40x128xf32>, vector<40x128xf32> -> vector<40x384xf32>
    %5 = arith.truncf %4 : vector<40x384xf32> to vector<40x384xbf16>
    %c0_3 = arith.constant 0 : index
    %c0_4 = arith.constant 0 : index
    %6 = vector.load %arg1[%c0_3, %c0_4] : memref<384x128xbf16, #tpu.memory_space<vmem>>, vector<384x128xbf16>
    %cst = arith.constant dense<0.000000e+00> : vector<40x128xf32>
    %7 = tpu.matmul %5, %6, %cst {dimension_numbers = #tpu.dot_dimension_numbers<[1], [0], [0], [1], [0, 0, 1, 1], [], []>} : vector<40x384xbf16>, vector<384x128xbf16>, vector<40x128xf32> -> vector<40x128xf32>
    %c0_5 = arith.constant 0 : index
    %c0_6 = arith.constant 0 : index
    %8 = vector.load %arg3[%c0_5, %c0_6] : memref<1x128xf32, #tpu.memory_space<vmem>>, vector<1x128xf32>
    %9 = vector.broadcast %8 : vector<1x128xf32> to vector<40x128xf32>
    %10 = arith.addf %7, %9 : vector<40x128xf32>
    %cst_7 = arith.constant 0.000000e+00 : f32
    %11 = vector.broadcast %cst_7 : f32 to vector<40x128xf32>
    %12 = arith.maximumf %10, %11 : vector<40x128xf32>
    %13 = arith.mulf %12, %1 : vector<40x128xf32>
    %c1_i32_8 = arith.constant 1 : i32
    %14 = tpu.dynamic_rotate %13 by %c1_i32_8 dim 0 : vector<40x128xf32>, i32 -> vector<40x128xf32>
    %c39_i32_9 = arith.constant 39 : i32
    %15 = tpu.dynamic_rotate %13 by %c39_i32_9 dim 0 : vector<40x128xf32>, i32 -> vector<40x128xf32>
    %16 = tpu.concatenate %14, %13, %15 in 1 : vector<40x128xf32>, vector<40x128xf32>, vector<40x128xf32> -> vector<40x384xf32>
    %17 = arith.truncf %16 : vector<40x384xf32> to vector<40x384xbf16>
    %c0_10 = arith.constant 0 : index
    %c0_11 = arith.constant 0 : index
    %18 = vector.load %arg2[%c0_10, %c0_11] : memref<384x128xbf16, #tpu.memory_space<vmem>>, vector<384x128xbf16>
    %cst_12 = arith.constant dense<0.000000e+00> : vector<40x128xf32>
    %19 = tpu.matmul %17, %18, %cst_12 {dimension_numbers = #tpu.dot_dimension_numbers<[1], [0], [0], [1], [0, 0, 1, 1], [], []>} : vector<40x384xbf16>, vector<384x128xbf16>, vector<40x128xf32> -> vector<40x128xf32>
    %c0_13 = arith.constant 0 : index
    %c0_14 = arith.constant 0 : index
    %20 = vector.load %arg4[%c0_13, %c0_14] : memref<1x128xf32, #tpu.memory_space<vmem>>, vector<1x128xf32>
    %21 = vector.broadcast %20 : vector<1x128xf32> to vector<40x128xf32>
    %22 = arith.addf %19, %21 : vector<40x128xf32>
    %23 = arith.addf %22, %0 : vector<40x128xf32>
    %cst_15 = arith.constant 0.000000e+00 : f32
    %24 = vector.broadcast %cst_15 : f32 to vector<40x128xf32>
    %25 = arith.maximumf %23, %24 : vector<40x128xf32>
    %c0_16 = arith.constant 0 : index
    %c0_17 = arith.constant 0 : index
    %26 = vector.load %arg6[%c0_16, %c0_17] : memref<40x128xf32, #tpu.memory_space<vmem>>, vector<40x128xf32>
    tpu.vector_store %arg6[%c0_16, %c0_17], %25 {strides = array<i32>} : memref<40x128xf32, #tpu.memory_space<vmem>>, vector<40x128xf32>,
    return
  }
}

</mosaic_0001>

<llo_original>
// kernel: resblock_forward.1
$region0: #{resblock_forward.1}
  #allocation0 [shape = 'u32[]', space=smem, size = 0x4, offset = 0x4, fixed_abs, tag = 'smem constant byte address 0x4 - core index']
  #allocation1 [shape = 'u32[144,128]{1,0:T(1,128)}', space=vmem, size = 0x12000, scoped, tag = 'internal scratch']
  %s0 = inlined_call_operand.vmem [shape: f32[40,128], index: 0, kind: input, shape index: {}]
  %s1 = inlined_call_operand.vmem [shape: bf16[384,128], index: 1, kind: input, shape index: {}]
  %s2 = inlined_call_operand.vmem [shape: bf16[384,128], index: 2, kind: input, shape index: {}]
  %s3 = inlined_call_operand.vmem [shape: f32[1,128], index: 3, kind: input, shape index: {}]
  %s4 = inlined_call_operand.vmem [shape: f32[1,128], index: 4, kind: input, shape index: {}]
  %s5 = inlined_call_operand.vmem [shape: f32[40,128], index: 5, kind: input, shape index: {}]
  %s6 = inlined_call_operand.vmem [shape: f32[40,128], index: 6, kind: output, shape index: {}]
  %s7 = sld [smem:[#allocation0]]
  $region34: #{resblock_forward.1} parent=0
    _
  %s9 = ssub.s32 1, %s7
  %s10 = scalar_select 0, %s9, %s7
  // Predicated region
  $region2: #{resblock_forward.1} parent=0 // pred_check
    _
  $region3: #{resblock_forward.1} parent=0 // pred_check_branch
    %12 = sbr.rel (0) target = $region5
  $region4: #{resblock_forward.1} parent=0 // pred_region
    _
  $region5: #{resblock_forward.1} parent=0 // pred_fallthru
    _
  // Predicated region
  $region6: #{resblock_forward.1} parent=0 // pred_check
    _
  $region7: #{resblock_forward.1} parent=0 // pred_check_branch
    %14 = sbr.rel (0) target = $region9
  $region8: #{resblock_forward.1} parent=0 // pred_region
    _
  $region9: #{resblock_forward.1} parent=0 // pred_fallthru
    _
  // Predicated region
  $region10: #{resblock_forward.1} parent=0 // pred_check
    _
  $region11: #{resblock_forward.1} parent=0 // pred_check_branch
    %16 = sbr.rel (0) target = $region13
  $region12: #{resblock_forward.1} parent=0 // pred_region
    _
  $region13: #{resblock_forward.1} parent=0 // pred_fallthru
    _
  // Predicated region
  $region14: #{resblock_forward.1} parent=0 // pred_check
    _
  $region15: #{resblock_forward.1} parent=0 // pred_check_branch
    %18 = sbr.rel (0) target = $region17
  $region16: #{resblock_forward.1} parent=0 // pred_region
    _
  $region17: #{resblock_forward.1} parent=0 // pred_fallthru
    _
  // Predicated region
  $region18: #{resblock_forward.1} parent=0 // pred_check
    _
  $region19: #{resblock_forward.1} parent=0 // pred_check_branch
    %20 = sbr.rel (0) target = $region21
  $region20: #{resblock_forward.1} parent=0 // pred_region
    _
  $region21: #{resblock_forward.1} parent=0 // pred_fallthru
    _
  // Predicated region
  $region22: #{resblock_forward.1} parent=0 // pred_check
    _
  $region23: #{resblock_forward.1} parent=0 // pred_check_branch
    %22 = sbr.rel (0) target = $region25
  $region24: #{resblock_forward.1} parent=0 // pred_region
    _
  $region25: #{resblock_forward.1} parent=0 // pred_fallthru
    _
  %v24 = vld [vmem:[%s0] sm:$0xff]
  %v25 = vld [vmem:[%s0 + $0x8] sm:$0xff]
  %v26 = vld [vmem:[%s0 + $0x10] sm:$0xff]
  %v27 = vld [vmem:[%s0 + $0x18] sm:$0xff]
  %v28 = vld [vmem:[%s0 + $0x20] sm:$0xff]
  %v29 = vld [vmem:[%s5] sm:$0xff]
  %v30 = vld [vmem:[%s5 + $0x8] sm:$0xff]
  %v31 = vld [vmem:[%s5 + $0x10] sm:$0xff]
  %v32 = vld [vmem:[%s5 + $0x18] sm:$0xff]
  %v33 = vld [vmem:[%s5 + $0x20] sm:$0xff]
  %v34 = vrot.slane %v24, 7
  %v35 = vrot.slane %v25, 7
  %v36 = vrot.slane %v26, 7
  %v37 = vrot.slane %v27, 7
  %v38 = vrot.slane %v28, 7
  %v39 = vlaneseq
  %v40 = vshrl.u32 %v39, 7
  %vm41 = vcmp.lt.s32.totalorder %v40, 1
  %v42 = vsel %vm41, %v37, %v38
  %v43 = vsel %vm41, %v36, %v37
  %v44 = vsel %vm41, %v35, %v36
  %v45 = vsel %vm41, %v34, %v35
  %v46 = vsel %vm41, %v38, %v34
  %v47 = vrot.slane %v24, 1
  %v48 = vrot.slane %v25, 1
  %v49 = vrot.slane %v26, 1
  %v50 = vrot.slane %v27, 1
  %v51 = vrot.slane %v28, 1
  %vm52 = vcmp.lt.s32.totalorder %v40, 7
  %v53 = vsel %vm52, %v50, %v51
  %v54 = vsel %vm52, %v49, %v50
  %v55 = vsel %vm52, %v48, %v49
  %v56 = vsel %vm52, %v47, %v48
  %v57 = vsel %vm52, %v51, %v47
  %v58 = vpack.c.bf16 %v45, %v46
  %v59 = vpack.c.bf16 %v25, %v24
  %v60 = vpack.c.bf16 %v55, %v56
  %v61 = vpack.c.bf16 %v43, %v44
  %v62 = vpack.c.bf16 %v27, %v26
  %v63 = vpack.c.bf16 %v53, %v54
  %v64 = vpack.c.bf16 %v42, %v42
  %v65 = vpack.c.bf16 %v28, %v28
  %v66 = vpack.c.bf16 %v57, %v57
  %v67 = vld [vmem:[%s1] sm:$0xf]
  %v68 = vld [vmem:[%s1 + $0x4] sm:$0xf]
  %v69 = vld [vmem:[%s1 + $0x8] sm:$0xf]
  %v70 = vld [vmem:[%s1 + $0xc] sm:$0xf]
  %v71 = vld [vmem:[%s1 + $0x10] sm:$0xf]
  %v72 = vld [vmem:[%s1 + $0x14] sm:$0xf]
  %v73 = vld [vmem:[%s1 + $0x18] sm:$0xf]
  %v74 = vld [vmem:[%s1 + $0x1c] sm:$0xf]
  %v75 = vld [vmem:[%s1 + $0x20] sm:$0xf]
  %v76 = vld [vmem:[%s1 + $0x24] sm:$0xf]
  %v77 = vld [vmem:[%s1 + $0x28] sm:$0xf]
  %v78 = vld [vmem:[%s1 + $0x2c] sm:$0xf]
  %v79 = vld [vmem:[%s1 + $0x30] sm:$0xf]
  %v80 = vld [vmem:[%s1 + $0x34] sm:$0xf]
  %v81 = vld [vmem:[%s1 + $0x38] sm:$0xf]
  %v82 = vld [vmem:[%s1 + $0x3c] sm:$0xf]
  %v83 = vld [vmem:[%s1 + $0x40] sm:$0xf]
  %v84 = vld [vmem:[%s1 + $0x44] sm:$0xf]
  %v85 = vld [vmem:[%s1 + $0x48] sm:$0xf]
  %v86 = vld [vmem:[%s1 + $0x4c] sm:$0xf]
  %v87 = vld [vmem:[%s1 + $0x50] sm:$0xf]
  %v88 = vld [vmem:[%s1 + $0x54] sm:$0xf]
  %v89 = vld [vmem:[%s1 + $0x58] sm:$0xf]
  %v90 = vld [vmem:[%s1 + $0x5c] sm:$0xf]
  %v91 = vld [vmem:[%s1 + $0x60] sm:$0xf]
  %v92 = vld [vmem:[%s1 + $0x64] sm:$0xf]
  %v93 = vld [vmem:[%s1 + $0x68] sm:$0xf]
  %v94 = vld [vmem:[%s1 + $0x6c] sm:$0xf]
  %v95 = vld [vmem:[%s1 + $0x70] sm:$0xf]
  %v96 = vld [vmem:[%s1 + $0x74] sm:$0xf]
  %v97 = vld [vmem:[%s1 + $0x78] sm:$0xf]
  %v98 = vld [vmem:[%s1 + $0x7c] sm:$0xf]
  %v99 = vld [vmem:[%s1 + $0x80] sm:$0xf]
  %v100 = vld [vmem:[%s1 + $0x84] sm:$0xf]
  %v101 = vld [vmem:[%s1 + $0x88] sm:$0xf]
  %v102 = vld [vmem:[%s1 + $0x8c] sm:$0xf]
  %v103 = vld [vmem:[%s1 + $0x90] sm:$0xf]
  %v104 = vld [vmem:[%s1 + $0x94] sm:$0xf]
  %v105 = vld [vmem:[%s1 + $0x98] sm:$0xf]
  %v106 = vld [vmem:[%s1 + $0x9c] sm:$0xf]
  %v107 = vld [vmem:[%s1 + $0xa0] sm:$0xf]
  %v108 = vld [vmem:[%s1 + $0xa4] sm:$0xf]
  %v109 = vld [vmem:[%s1 + $0xa8] sm:$0xf]
  %v110 = vld [vmem:[%s1 + $0xac] sm:$0xf]
  %v111 = vld [vmem:[%s1 + $0xb0] sm:$0xf]
  %v112 = vld [vmem:[%s1 + $0xb4] sm:$0xf]
  %v113 = vld [vmem:[%s1 + $0xb8] sm:$0xf]
  %v114 = vld [vmem:[%s1 + $0xbc] sm:$0xf]
  %v115 = vld [vmem:[%s3] sm:$0x1]
  %v117 = vlaneseq
  %v118 = vshrl.u32 %v117, 7
  %v119 = vsub.s32 0, %v118
  %v120 = vrot.slane %v115, %v119
  %v170 = vunpack.c.l.b16 %v67
  %v171 = vunpack.c.l.b16 %v68
  %v172 = vunpack.c.l.b16 %v69
  %v173 = vunpack.c.l.b16 %v70
  %v174 = vunpack.c.l.b16 %v71
  %v175 = vunpack.c.l.b16 %v72
  %v176 = vunpack.c.l.b16 %v73
  %v177 = vunpack.c.l.b16 %v74
  %v178 = vunpack.c.l.b16 %v75
  %v179 = vunpack.c.l.b16 %v76
  %v180 = vunpack.c.l.b16 %v77
  %v181 = vunpack.c.l.b16 %v78
  %v182 = vunpack.c.l.b16 %v79
  %v183 = vunpack.c.l.b16 %v80
  %v184 = vunpack.c.l.b16 %v81
  %v185 = vunpack.c.l.b16 %v82
  %v186 = vunpack.c.l.b16 %v83
  %v187 = vunpack.c.l.b16 %v84
  %v188 = vunpack.c.l.b16 %v85
  %v189 = vunpack.c.l.b16 %v86
  %v190 = vunpack.c.l.b16 %v87
  %v191 = vunpack.c.l.b16 %v88
  %v192 = vunpack.c.l.b16 %v89
  %v193 = vunpack.c.l.b16 %v90
  %v194 = vunpack.c.l.b16 %v91
  %v195 = vunpack.c.l.b16 %v92
  %v196 = vunpack.c.l.b16 %v93
  %v197 = vunpack.c.l.b16 %v94
  %v198 = vunpack.c.l.b16 %v95
  %v199 = vunpack.c.l.b16 %v96
  %v200 = vunpack.c.l.b16 %v97
  %v201 = vunpack.c.l.b16 %v98
  %v202 = vunpack.c.l.b16 %v99
  %v203 = vunpack.c.l.b16 %v100
  %v204 = vunpack.c.l.b16 %v101
  %v205 = vunpack.c.l.b16 %v102
  %v206 = vunpack.c.l.b16 %v103
  %v207 = vunpack.c.l.b16 %v104
  %v208 = vunpack.c.l.b16 %v105
  %v209 = vunpack.c.l.b16 %v106
  %v210 = vunpack.c.l.b16 %v107
  %v211 = vunpack.c.l.b16 %v108
  %v212 = vunpack.c.l.b16 %v109
  %v213 = vunpack.c.l.b16 %v110
  %v214 = vunpack.c.l.b16 %v111
  %v215 = vunpack.c.l.b16 %v112
  %v216 = vunpack.c.l.b16 %v113
  %v217 = vunpack.c.l.b16 %v114
  %v218 = vpack.c.b16 %v171, %v170
  %v219 = vpack.c.b16 %v173, %v172
  %v220 = vpack.c.b16 %v175, %v174
  %v221 = vpack.c.b16 %v177, %v176
  %v222 = vpack.c.b16 %v179, %v178
  %v223 = vpack.c.b16 %v181, %v180
  %v224 = vpack.c.b16 %v183, %v182
  %v225 = vpack.c.b16 %v185, %v184
  %v226 = vpack.c.b16 %v187, %v186
  %v227 = vpack.c.b16 %v189, %v188
  %v228 = vpack.c.b16 %v191, %v190
  %v229 = vpack.c.b16 %v193, %v192
  %v230 = vpack.c.b16 %v195, %v194
  %v231 = vpack.c.b16 %v197, %v196
  %v232 = vpack.c.b16 %v199, %v198
  %v233 = vpack.c.b16 %v201, %v200
  %v234 = vpack.c.b16 %v203, %v202
  %v235 = vpack.c.b16 %v205, %v204
  %v236 = vpack.c.b16 %v207, %v206
  %v237 = vpack.c.b16 %v209, %v208
  %v238 = vpack.c.b16 %v211, %v210
  %v239 = vpack.c.b16 %v213, %v212
  %v240 = vpack.c.b16 %v215, %v214
  %v241 = vpack.c.b16 %v217, %v216
  %266 = vmatprep.subr.bf16.mxu0 0
  %267 = vmatpush1.bf16.msra.mxu0 %v218
  %268 = vmatprep.subr.bf16.mxu0 0
  %269 = vmatpush1.bf16.msra.mxu0 %v219
  %270 = vmatprep.subr.bf16.mxu0 0
  %271 = vmatpush1.bf16.msra.mxu0 %v220
  %272 = vmatprep.subr.bf16.mxu0 0
  %273 = vmatpush1.bf16.msra.mxu0 %v221
  %274 = vmatprep.subr.bf16.mxu0 0
  %275 = vmatpush1.bf16.msra.mxu0 %v222
  %276 = vmatprep.subr.bf16.mxu0 0
  %277 = vmatpush1.bf16.msra.mxu0 %v223
  %278 = vmatprep.subr.bf16.mxu0 0
  %279 = vmatpush1.bf16.msra.mxu0 %v224
  %280 = vmatprep.subr.bf16.mxu0 0
  %281 = vmatpush1.bf16.msra.mxu0 %v225
  %282 = vmatprep.subr.bf16.mxu0 0
  %283 = vmatpush1.bf16.msra.mxu0 %v226
  %284 = vmatprep.subr.bf16.mxu0 0
  %285 = vmatpush1.bf16.msra.mxu0 %v227
  %286 = vmatprep.subr.bf16.mxu0 0
  %287 = vmatpush1.bf16.msra.mxu0 %v228
  %288 = vmatprep.subr.bf16.mxu0 0
  %289 = vmatpush1.bf16.msra.mxu0 %v229
  %290 = vmatprep.subr.bf16.mxu0 0
  %291 = vmatpush1.bf16.msra.mxu0 %v230
  %292 = vmatprep.subr.bf16.mxu0 0
  %293 = vmatpush1.bf16.msra.mxu0 %v231
  %294 = vmatprep.subr.bf16.mxu0 0
  %295 = vmatpush1.bf16.msra.mxu0 %v232
  %296 = vmatprep.subr.bf16.mxu0 0
  %297 = vmatpush1.bf16.msra.mxu0 %v233
  %298 = vmatprep.mubr.bf16.mxu0 %v59
  %299 = vmatmul.mubr.bf16.gmra.mrb[0].mxu0 %v58
  %v300 = vpop.f32.mrb[0].mxu0
  %v301 = vadd.f32 %v120, %v300
  %v302 = vpop.f32.mrb[0].mxu0
  %v303 = vpop.f32.mrb[0].mxu0
  %v304 = vadd.f32 %v120, %v303
  %v305 = vpop.f32.mrb[0].mxu0
  %306 = vmatprep.mubr.bf16.mxu0 %v62
  %307 = vmatmul.mubr.bf16.gmra.mrb[0].mxu0 %v61
  %v308 = vpop.f32.mrb[0].mxu0
  %v309 = vadd.f32 %v120, %v308
  %v310 = vpop.f32.mrb[0].mxu0
  %v311 = vpop.f32.mrb[0].mxu0
  %v312 = vadd.f32 %v120, %v311
  %v313 = vpop.f32.mrb[0].mxu0
  %314 = vmatprep.mubr.bf16.mxu0 %v65
  %315 = vmatmul.mubr.bf16.gmra.mrb[0].mxu0 %v64
  %v316 = vpop.f32.mrb[0].mxu0
  %v317 = vadd.f32 %v120, %v316
  %v318 = vpop.f32.mrb[0].mxu0
  %v319 = vpop.f32.mrb[0].mxu0
  %v320 = vpop.f32.mrb[0].mxu0
  %321 = vdwg.mxu0
  %322 = vmatprep.subr.bf16.mxu0 0
  %323 = vmatpush1.bf16.msra.mxu0 %v234
  %324 = vmatprep.subr.bf16.mxu0 0
  %325 = vmatpush1.bf16.msra.mxu0 %v235
  %326 = vmatprep.subr.bf16.mxu0 0
  %327 = vmatpush1.bf16.msra.mxu0 %v236
  %328 = vmatprep.subr.bf16.mxu0 0
  %329 = vmatpush1.bf16.msra.mxu0 %v237
  %330 = vmatprep.subr.bf16.mxu0 0
  %331 = vmatpush1.bf16.msra.mxu0 %v238
  %332 = vmatprep.subr.bf16.mxu0 0
  %333 = vmatpush1.bf16.msra.mxu0 %v239
  %334 = vmatprep.subr.bf16.mxu0 0
  %335 = vmatpush1.bf16.msra.mxu0 %v240
  %336 = vmatprep.subr.bf16.mxu0 0
  %337 = vmatpush1.bf16.msra.mxu0 %v241
  %338 = vmatprep.subr.bf16.mxu0 0
  %339 = vmatpush1.bf16.msra.mxu0 0
  %340 = vmatprep.subr.bf16.mxu0 0
  %341 = vmatpush1.bf16.msra.mxu0 0
  %342 = vmatprep.subr.bf16.mxu0 0
  %343 = vmatpush1.bf16.msra.mxu0 0
  %344 = vmatprep.subr.bf16.mxu0 0
  %345 = vmatpush1.bf16.msra.mxu0 0
  %346 = vmatprep.subr.bf16.mxu0 0
  %347 = vmatpush1.bf16.msra.mxu0 0
  %348 = vmatprep.subr.bf16.mxu0 0
  %349 = vmatpush1.bf16.msra.mxu0 0
  %350 = vmatprep.subr.bf16.mxu0 0
  %351 = vmatpush1.bf16.msra.mxu0 0
  %352 = vmatprep.subr.bf16.mxu0 0
  %353 = vmatpush1.bf16.msra.mxu0 0
  %354 = vmatprep.mubr.bf16.mxu0 0
  %355 = vmatmul.mubr.bf16.gmra.mrb[0].mxu0 %v60
  %v356 = vpop.f32.mrb[0].mxu0
  %v357 = vadd.f32 %v301, %v356
  %v358 = vpop.f32.mrb[0].mxu0
  %v359 = vpop.f32.mrb[0].mxu0
  %v360 = vadd.f32 %v304, %v359
  %v361 = vpop.f32.mrb[0].mxu0
  %362 = vmatprep.mubr.bf16.mxu0 0
  %363 = vmatmul.mubr.bf16.gmra.mrb[0].mxu0 %v63
  %v364 = vpop.f32.mrb[0].mxu0
  %v365 = vadd.f32 %v309, %v364
  %v366 = vpop.f32.mrb[0].mxu0
  %v367 = vpop.f32.mrb[0].mxu0
  %v368 = vadd.f32 %v312, %v367
  %v369 = vpop.f32.mrb[0].mxu0
  %370 = vmatprep.mubr.bf16.mxu0 0
  %371 = vmatmul.mubr.bf16.gmra.mrb[0].mxu0 %v66
  %v372 = vpop.f32.mrb[0].mxu0
  %v373 = vadd.f32 %v317, %v372
  %v374 = vpop.f32.mrb[0].mxu0
  %v375 = vpop.f32.mrb[0].mxu0
  %v376 = vpop.f32.mrb[0].mxu0
  %377 = vdwg.mxu0
  %v378 = vmax.f32 %v357, 0.0
  %v379 = vmax.f32 %v360, 0.0
  %v380 = vmax.f32 %v365, 0.0
  %v381 = vmax.f32 %v368, 0.0
  %v382 = vmax.f32 %v373, 0.0
  %v383 = vmul.f32 %v378, %v29
  %v384 = vmul.f32 %v379, %v30
  %v385 = vmul.f32 %v380, %v31
  %v386 = vmul.f32 %v381, %v32
  %v387 = vmul.f32 %v382, %v33
  %v388 = vrot.slane %v383, 7
  %v389 = vrot.slane %v384, 7
  %v390 = vrot.slane %v385, 7
  %v391 = vrot.slane %v386, 7
  %v392 = vrot.slane %v387, 7
  %v393 = vsel %vm41, %v391, %v392
  %v394 = vsel %vm41, %v390, %v391
  %v395 = vsel %vm41, %v389, %v390
  %v396 = vsel %vm41, %v388, %v389
  %v397 = vsel %vm41, %v392, %v388
  %v398 = vrot.slane %v383, 1
  %v399 = vrot.slane %v384, 1
  %v400 = vrot.slane %v385, 1
  %v401 = vrot.slane %v386, 1
  %v402 = vrot.slane %v387, 1
  %v403 = vsel %vm52, %v401, %v402
  %v404 = vsel %vm52, %v400, %v401
  %v405 = vsel %vm52, %v399, %v400
  %v406 = vsel %vm52, %v398, %v399
  %v407 = vsel %vm52, %v402, %v398
  %v408 = vpack.c.bf16 %v396, %v397
  %v409 = vpack.c.bf16 %v384, %v383
  %v410 = vpack.c.bf16 %v405, %v406
  %v411 = vpack.c.bf16 %v394, %v395
  %v412 = vpack.c.bf16 %v386, %v385
  %v413 = vpack.c.bf16 %v403, %v404
  %v414 = vpack.c.bf16 %v393, %v393
  %v415 = vpack.c.bf16 %v387, %v387
  %v416 = vpack.c.bf16 %v407, %v407
  %v417 = vld [vmem:[%s2] sm:$0xf]
  %v418 = vld [vmem:[%s2 + $0x4] sm:$0xf]
  %v419 = vld [vmem:[%s2 + $0x8] sm:$0xf]
  %v420 = vld [vmem:[%s2 + $0xc] sm:$0xf]
  %v421 = vld [vmem:[%s2 + $0x10] sm:$0xf]
  %v422 = vld [vmem:[%s2 + $0x14] sm:$0xf]
  %v423 = vld [vmem:[%s2 + $0x18] sm:$0xf]
  %v424 = vld [vmem:[%s2 + $0x1c] sm:$0xf]
  %v425 = vld [vmem:[%s2 + $0x20] sm:$0xf]
  %v426 = vld [vmem:[%s2 + $0x24] sm:$0xf]
  %v427 = vld [vmem:[%s2 + $0x28] sm:$0xf]
  %v428 = vld [vmem:[%s2 + $0x2c] sm:$0xf]
  %v429 = vld [vmem:[%s2 + $0x30] sm:$0xf]
  %v430 = vld [vmem:[%s2 + $0x34] sm:$0xf]
  %v431 = vld [vmem:[%s2 + $0x38] sm:$0xf]
  %v432 = vld [vmem:[%s2 + $0x3c] sm:$0xf]
  %v433 = vld [vmem:[%s2 + $0x40] sm:$0xf]
  %v434 = vld [vmem:[%s2 + $0x44] sm:$0xf]
  %v435 = vld [vmem:[%s2 + $0x48] sm:$0xf]
  %v436 = vld [vmem:[%s2 + $0x4c] sm:$0xf]
  %v437 = vld [vmem:[%s2 + $0x50] sm:$0xf]
  %v438 = vld [vmem:[%s2 + $0x54] sm:$0xf]
  %v439 = vld [vmem:[%s2 + $0x58] sm:$0xf]
  %v440 = vld [vmem:[%s2 + $0x5c] sm:$0xf]
  %v441 = vld [vmem:[%s2 + $0x60] sm:$0xf]
  %v442 = vld [vmem:[%s2 + $0x64] sm:$0xf]
  %v443 = vld [vmem:[%s2 + $0x68] sm:$0xf]
  %v444 = vld [vmem:[%s2 + $0x6c] sm:$0xf]
  %v445 = vld [vmem:[%s2 + $0x70] sm:$0xf]
  %v446 = vld [vmem:[%s2 + $0x74] sm:$0xf]
  %v447 = vld [vmem:[%s2 + $0x78] sm:$0xf]
  %v448 = vld [vmem:[%s2 + $0x7c] sm:$0xf]
  %v449 = vld [vmem:[%s2 + $0x80] sm:$0xf]
  %v450 = vld [vmem:[%s2 + $0x84] sm:$0xf]
  %v451 = vld [vmem:[%s2 + $0x88] sm:$0xf]
  %v452 = vld [vmem:[%s2 + $0x8c] sm:$0xf]
  %v453 = vld [vmem:[%s2 + $0x90] sm:$0xf]
  %v454 = vld [vmem:[%s2 + $0x94] sm:$0xf]
  %v455 = vld [vmem:[%s2 + $0x98] sm:$0xf]
  %v456 = vld [vmem:[%s2 + $0x9c] sm:$0xf]
  %v457 = vld [vmem:[%s2 + $0xa0] sm:$0xf]
  %v458 = vld [vmem:[%s2 + $0xa4] sm:$0xf]
  %v459 = vld [vmem:[%s2 + $0xa8] sm:$0xf]
  %v460 = vld [vmem:[%s2 + $0xac] sm:$0xf]
  %v461 = vld [vmem:[%s2 + $0xb0] sm:$0xf]
  %v462 = vld [vmem:[%s2 + $0xb4] sm:$0xf]
  %v463 = vld [vmem:[%s2 + $0xb8] sm:$0xf]
  %v464 = vld [vmem:[%s2 + $0xbc] sm:$0xf]
  %v465 = vld [vmem:[%s4] sm:$0x1]
  %v467 = vlaneseq
  %v468 = vshrl.u32 %v467, 7
  %v469 = vsub.s32 0, %v468
  %v470 = vrot.slane %v465, %v469
  %v520 = vunpack.c.l.b16 %v417
  %v521 = vunpack.c.l.b16 %v418
  %v522 = vunpack.c.l.b16 %v419
  %v523 = vunpack.c.l.b16 %v420
  %v524 = vunpack.c.l.b16 %v421
  %v525 = vunpack.c.l.b16 %v422
  %v526 = vunpack.c.l.b16 %v423
  %v527 = vunpack.c.l.b16 %v424
  %v528 = vunpack.c.l.b16 %v425
  %v529 = vunpack.c.l.b16 %v426
  %v530 = vunpack.c.l.b16 %v427
  %v531 = vunpack.c.l.b16 %v428
  %v532 = vunpack.c.l.b16 %v429
  %v533 = vunpack.c.l.b16 %v430
  %v534 = vunpack.c.l.b16 %v431
  %v535 = vunpack.c.l.b16 %v432
  %v536 = vunpack.c.l.b16 %v433
  %v537 = vunpack.c.l.b16 %v434
  %v538 = vunpack.c.l.b16 %v435
  %v539 = vunpack.c.l.b16 %v436
  %v540 = vunpack.c.l.b16 %v437
  %v541 = vunpack.c.l.b16 %v438
  %v542 = vunpack.c.l.b16 %v439
  %v543 = vunpack.c.l.b16 %v440
  %v544 = vunpack.c.l.b16 %v441
  %v545 = vunpack.c.l.b16 %v442
  %v546 = vunpack.c.l.b16 %v443
  %v547 = vunpack.c.l.b16 %v444
  %v548 = vunpack.c.l.b16 %v445
  %v549 = vunpack.c.l.b16 %v446
  %v550 = vunpack.c.l.b16 %v447
  %v551 = vunpack.c.l.b16 %v448
  %v552 = vunpack.c.l.b16 %v449
  %v553 = vunpack.c.l.b16 %v450
  %v554 = vunpack.c.l.b16 %v451
  %v555 = vunpack.c.l.b16 %v452
  %v556 = vunpack.c.l.b16 %v453
  %v557 = vunpack.c.l.b16 %v454
  %v558 = vunpack.c.l.b16 %v455
  %v559 = vunpack.c.l.b16 %v456
  %v560 = vunpack.c.l.b16 %v457
  %v561 = vunpack.c.l.b16 %v458
  %v562 = vunpack.c.l.b16 %v459
  %v563 = vunpack.c.l.b16 %v460
  %v564 = vunpack.c.l.b16 %v461
  %v565 = vunpack.c.l.b16 %v462
  %v566 = vunpack.c.l.b16 %v463
  %v567 = vunpack.c.l.b16 %v464
  %v568 = vpack.c.b16 %v521, %v520
  %v569 = vpack.c.b16 %v523, %v522
  %v570 = vpack.c.b16 %v525, %v524
  %v571 = vpack.c.b16 %v527, %v526
  %v572 = vpack.c.b16 %v529, %v528
  %v573 = vpack.c.b16 %v531, %v530
  %v574 = vpack.c.b16 %v533, %v532
  %v575 = vpack.c.b16 %v535, %v534
  %v576 = vpack.c.b16 %v537, %v536
  %v577 = vpack.c.b16 %v539, %v538
  %v578 = vpack.c.b16 %v541, %v540
  %v579 = vpack.c.b16 %v543, %v542
  %v580 = vpack.c.b16 %v545, %v544
  %v581 = vpack.c.b16 %v547, %v546
  %v582 = vpack.c.b16 %v549, %v548
  %v583 = vpack.c.b16 %v551, %v550
  %v584 = vpack.c.b16 %v553, %v552
  %v585 = vpack.c.b16 %v555, %v554
  %v586 = vpack.c.b16 %v557, %v556
  %v587 = vpack.c.b16 %v559, %v558
  %v588 = vpack.c.b16 %v561, %v560
  %v589 = vpack.c.b16 %v563, %v562
  %v590 = vpack.c.b16 %v565, %v564
  %v591 = vpack.c.b16 %v567, %v566
  %616 = vmatprep.subr.bf16.mxu0 0
  %617 = vmatpush1.bf16.msra.mxu0 %v568
  %618 = vmatprep.subr.bf16.mxu0 0
  %619 = vmatpush1.bf16.msra.mxu0 %v569
  %620 = vmatprep.subr.bf16.mxu0 0
  %621 = vmatpush1.bf16.msra.mxu0 %v570
  %622 = vmatprep.subr.bf16.mxu0 0
  %623 = vmatpush1.bf16.msra.mxu0 %v571
  %624 = vmatprep.subr.bf16.mxu0 0
  %625 = vmatpush1.bf16.msra.mxu0 %v572
  %626 = vmatprep.subr.bf16.mxu0 0
  %627 = vmatpush1.bf16.msra.mxu0 %v573
  %628 = vmatprep.subr.bf16.mxu0 0
  %629 = vmatpush1.bf16.msra.mxu0 %v574
  %630 = vmatprep.subr.bf16.mxu0 0
  %631 = vmatpush1.bf16.msra.mxu0 %v575
  %632 = vmatprep.subr.bf16.mxu0 0
  %633 = vmatpush1.bf16.msra.mxu0 %v576
  %634 = vmatprep.subr.bf16.mxu0 0
  %635 = vmatpush1.bf16.msra.mxu0 %v577
  %636 = vmatprep.subr.bf16.mxu0 0
  %637 = vmatpush1.bf16.msra.mxu0 %v578
  %638 = vmatprep.subr.bf16.mxu0 0
  %639 = vmatpush1.bf16.msra.mxu0 %v579
  %640 = vmatprep.subr.bf16.mxu0 0
  %641 = vmatpush1.bf16.msra.mxu0 %v580
  %642 = vmatprep.subr.bf16.mxu0 0
  %643 = vmatpush1.bf16.msra.mxu0 %v581
  %644 = vmatprep.subr.bf16.mxu0 0
  %645 = vmatpush1.bf16.msra.mxu0 %v582
  %646 = vmatprep.subr.bf16.mxu0 0
  %647 = vmatpush1.bf16.msra.mxu0 %v583
  %648 = vmatprep.mubr.bf16.mxu0 %v409
  %649 = vmatmul.mubr.bf16.gmra.mrb[0].mxu0 %v408
  %v650 = vpop.f32.mrb[0].mxu0
  %v651 = vadd.f32 %v470, %v650
  %v652 = vpop.f32.mrb[0].mxu0
  %v653 = vpop.f32.mrb[0].mxu0
  %v654 = vadd.f32 %v470, %v653
  %v655 = vpop.f32.mrb[0].mxu0
  %656 = vmatprep.mubr.bf16.mxu0 %v412
  %657 = vmatmul.mubr.bf16.gmra.mrb[0].mxu0 %v411
  %v658 = vpop.f32.mrb[0].mxu0
  %v659 = vadd.f32 %v470, %v658
  %v660 = vpop.f32.mrb[0].mxu0
  %v661 = vpop.f32.mrb[0].mxu0
  %v662 = vadd.f32 %v470, %v661
  %v663 = vpop.f32.mrb[0].mxu0
  %664 = vmatprep.mubr.bf16.mxu0 %v415
  %665 = vmatmul.mubr.bf16.gmra.mrb[0].mxu0 %v414
  %v666 = vpop.f32.mrb[0].mxu0
  %v667 = vadd.f32 %v470, %v666
  %v668 = vpop.f32.mrb[0].mxu0
  %v669 = vpop.f32.mrb[0].mxu0
  %v670 = vpop.f32.mrb[0].mxu0
  %671 = vdwg.mxu0
  %672 = vmatprep.subr.bf16.mxu0 0
  %673 = vmatpush1.bf16.msra.mxu0 %v584
  %674 = vmatprep.subr.bf16.mxu0 0
  %675 = vmatpush1.bf16.msra.mxu0 %v585
  %676 = vmatprep.subr.bf16.mxu0 0
  %677 = vmatpush1.bf16.msra.mxu0 %v586
  %678 = vmatprep.subr.bf16.mxu0 0
  %679 = vmatpush1.bf16.msra.mxu0 %v587
  %680 = vmatprep.subr.bf16.mxu0 0
  %681 = vmatpush1.bf16.msra.mxu0 %v588
  %682 = vmatprep.subr.bf16.mxu0 0
  %683 = vmatpush1.bf16.msra.mxu0 %v589
  %684 = vmatprep.subr.bf16.mxu0 0
  %685 = vmatpush1.bf16.msra.mxu0 %v590
  %686 = vmatprep.subr.bf16.mxu0 0
  %687 = vmatpush1.bf16.msra.mxu0 %v591
  %688 = vmatprep.subr.bf16.mxu0 0
  %689 = vmatpush1.bf16.msra.mxu0 0
  %690 = vmatprep.subr.bf16.mxu0 0
  %691 = vmatpush1.bf16.msra.mxu0 0
  %692 = vmatprep.subr.bf16.mxu0 0
  %693 = vmatpush1.bf16.msra.mxu0 0
  %694 = vmatprep.subr.bf16.mxu0 0
  %695 = vmatpush1.bf16.msra.mxu0 0
  %696 = vmatprep.subr.bf16.mxu0 0
  %697 = vmatpush1.bf16.msra.mxu0 0
  %698 = vmatprep.subr.bf16.mxu0 0
  %699 = vmatpush1.bf16.msra.mxu0 0
  %700 = vmatprep.subr.bf16.mxu0 0
  %701 = vmatpush1.bf16.msra.mxu0 0
  %702 = vmatprep.subr.bf16.mxu0 0
  %703 = vmatpush1.bf16.msra.mxu0 0
  %704 = vmatprep.mubr.bf16.mxu0 0
  %705 = vmatmul.mubr.bf16.gmra.mrb[0].mxu0 %v410
  %v706 = vpop.f32.mrb[0].mxu0
  %v707 = vadd.f32 %v651, %v706
  %v708 = vpop.f32.mrb[0].mxu0
  %v709 = vpop.f32.mrb[0].mxu0
  %v710 = vadd.f32 %v654, %v709
  %v711 = vpop.f32.mrb[0].mxu0
  %712 = vmatprep.mubr.bf16.mxu0 0
  %713 = vmatmul.mubr.bf16.gmra.mrb[0].mxu0 %v413
  %v714 = vpop.f32.mrb[0].mxu0
  %v715 = vadd.f32 %v659, %v714
  %v716 = vpop.f32.mrb[0].mxu0
  %v717 = vpop.f32.mrb[0].mxu0
  %v718 = vadd.f32 %v662, %v717
  %v719 = vpop.f32.mrb[0].mxu0
  %720 = vmatprep.mubr.bf16.mxu0 0
  %721 = vmatmul.mubr.bf16.gmra.mrb[0].mxu0 %v416
  %v722 = vpop.f32.mrb[0].mxu0
  %v723 = vadd.f32 %v667, %v722
  %v724 = vpop.f32.mrb[0].mxu0
  %v725 = vpop.f32.mrb[0].mxu0
  %v726 = vpop.f32.mrb[0].mxu0
  %727 = vdwg.mxu0
  %v728 = vadd.f32 %v707, %v24
  %v729 = vadd.f32 %v710, %v25
  %v730 = vadd.f32 %v715, %v26
  %v731 = vadd.f32 %v718, %v27
  %v732 = vadd.f32 %v723, %v28
  %v733 = vmax.f32 %v728, 0.0
  %v734 = vmax.f32 %v729, 0.0
  %v735 = vmax.f32 %v730, 0.0
  %v736 = vmax.f32 %v731, 0.0
  %v737 = vmax.f32 %v732, 0.0
  %738 = vst [vmem:[%s6] sm:$0xff] %v733
  %739 = vst [vmem:[%s6 + $0x8] sm:$0xff] %v734
  %740 = vst [vmem:[%s6 + $0x10] sm:$0xff] %v735
  %741 = vst [vmem:[%s6 + $0x18] sm:$0xff] %v736
  %742 = vst [vmem:[%s6 + $0x20] sm:$0xff] %v737
  // Predicated region
  $region26: #{resblock_forward.1} parent=0 // pred_check
    _
  $region27: #{resblock_forward.1} parent=0 // pred_check_branch
    %744 = sbr.rel (0) target = $region29
  $region28: #{resblock_forward.1} parent=0 // pred_region
    _
  $region29: #{resblock_forward.1} parent=0 // pred_fallthru
    _
  // Predicated region
  $region30: #{resblock_forward.1} parent=0 // pred_check
    _
  $region31: #{resblock_forward.1} parent=0 // pred_check_branch
    %746 = sbr.rel (0) target = $region33
  $region32: #{resblock_forward.1} parent=0 // pred_region
    _
  $region33: #{resblock_forward.1} parent=0 // pred_fallthru
    _

</llo_original>
